<compile_context>
chip_gen: v5e
topology: v5e:2x2
jax: 0.10.0
libtpu: 0.0.40
codegen_flags: <defaults>
</compile_context>

<pallas_src>
import jax
import jax.numpy as jnp
import numpy as np
from jax.experimental import pallas as pl
from jax.experimental.pallas import tpu as pltpu


def _upsample_kernel(x_ref, rw_ref, o_ref):
    # x_ref : (R, W)        block of flattened input rows (one row per (n,c,h))
    # rw_ref: (W, s*s*W)    fused 0/1 expansion (width repeat, tiled s times)
    # o_ref : (R, s*s*W)    the s output image rows each input row produces,
    #                       laid out contiguously (matches NCHW output memory)
    o_ref[...] = jnp.dot(
        x_ref[...], rw_ref[...], preferred_element_type=jnp.float32
    ).astype(o_ref.dtype)


def _pick_block_rows(m, w, s, itemsize):
    """Rows of the flattened (N*C*H, W) input per grid step.

    Targets ~1 MiB output tiles (mem-bound: big tiles amortize the ~0.35 us
    per-step pipeline overhead), keeps >=2 grid steps when possible (v7x has
    2 TensorCores), and keeps the second-minor block dim a multiple of 8.
    """
    out_row_bytes = s * s * w * itemsize
    target = max(256, (1 << 20) // max(1, out_row_bytes))
    half = -(-m // 2)                      # ceil(m / 2)
    r = min(target, half)
    if r >= m:
        return m                           # single full block (always legal)
    r = max(8, (r // 8) * 8)
    if r >= m:
        return m
    return r


def tt_upsample_nearest2d(x, scale_factor: float = 2.0):
    assert scale_factor % 1 == 0 and scale_factor > 0, (
        "We only support scaling by positive integer values")
    s = int(scale_factor)
    if s == 1:
        return x

    N, C, H, W = x.shape
    Ho, Wo = H * s, W * s
    M = N * C * H
    itemsize = jnp.dtype(x.dtype).itemsize

    # Free (contiguous) view: one row per (n, c, h).
    x2d = x.reshape(M, W)

    # Fused 0/1 expansion matrix, built in the NATIVE dtype (no f32 upcast):
    #   rw [w, j]          = 1  iff  j // s == w        (width repeat_interleave)
    #   rw2 = tile(rw, s)  ->  out_row = s copies of the width-expanded row,
    # which is exactly the s consecutive output image rows in memory order.
    rw = (jnp.arange(W, dtype=jnp.int32)[:, None]
          == (jnp.arange(Wo, dtype=jnp.int32)[None, :] // s)).astype(x.dtype)
    rw2 = jnp.tile(rw, (1, s))                         # (W, s*s*W)

    R = _pick_block_rows(M, W, s, itemsize)
    grid = (pl.cdiv(M, R),)

    out_cols = s * s * W
    bytes_accessed = (M * W + M * out_cols + W * out_cols) * itemsize
    cost = pl.CostEstimate(
        flops=2 * M * W * out_cols,        # tiny; the op is HBM-bound
        transcendentals=0,
        bytes_accessed=bytes_accessed,
    )

    y2d = pl.pallas_call(
        _upsample_kernel,
        out_shape=jax.ShapeDtypeStruct((M, out_cols), x.dtype),
        grid=grid,
        in_specs=[
            pl.BlockSpec((R, W), lambda i: (i, 0)),
            pl.BlockSpec((W, out_cols), lambda i: (0, 0)),
        ],
        out_specs=pl.BlockSpec((R, out_cols), lambda i: (i, 0)),
        compiler_params=pltpu.CompilerParams(
            dimension_semantics=("parallel",),
            vmem_limit_bytes=32 * 1024 * 1024,
        ),
        cost_estimate=cost,
    )(x2d, rw2)

    # Free bitcast reshape back to NCHW.
    return y2d.reshape(N, C, Ho, Wo)


if __name__ == "__main__":
    key = jax.random.PRNGKey(0)
    N, C, H, W = 2, 4, 16, 16
    scale = 2.0

    x = jax.random.normal(key, (N, C, H, W), dtype=jnp.float32)

    y = tt_upsample_nearest2d(x, scale_factor=scale)
    y = jax.block_until_ready(y)

    # Reference: nearest-neighbour upsample == repeat_interleave on W then H.
    s = int(scale)
    ref = jnp.repeat(jnp.repeat(x, s, axis=3), s, axis=2)
    np.testing.assert_allclose(np.asarray(y), np.asarray(ref), rtol=0, atol=0)
    assert y.shape == (N, C, H * s, W * s)
    assert y.dtype == x.dtype

    print("KERNEL_OK")
</pallas_src>

<mosaic_0001>
module attributes {stable_mosaic.version = 11 : i64} {
  func.func @_upsample_kernel(%arg0: i32, %arg1: memref<64x16xf32, #tpu.memory_space<vmem>>, %arg2: memref<16x64xf32, #tpu.memory_space<vmem>>, %arg3: memref<64x64xf32, #tpu.memory_space<vmem>>) attributes {dimension_semantics = [#tpu.dimension_semantics<parallel>], iteration_bounds = array<i64: 2>, scalar_prefetch = 0 : i64, scratch_operands = 0 : i64, tpu.core_type = #tpu.core_type<tc>, window_params = [{transform_indices = @transform_0, window_bounds = array<i64: 64, 16>}, {pipeline_mode = #tpu.pipeline_mode<synchronous>, transform_indices = @transform_1, window_bounds = array<i64: 16, 64>}, {transform_indices = @transform_2, window_bounds = array<i64: 64, 64>}]} {
    %c0 = arith.constant 0 : index
    %c0_0 = arith.constant 0 : index
    %0 = vector.load %arg1[%c0, %c0_0] : memref<64x16xf32, #tpu.memory_space<vmem>>, vector<64x16xf32>
    %c0_1 = arith.constant 0 : index
    %c0_2 = arith.constant 0 : index
    %1 = vector.load %arg2[%c0_1, %c0_2] : memref<16x64xf32, #tpu.memory_space<vmem>>, vector<16x64xf32>
    %cst = arith.constant dense<0.000000e+00> : vector<64x64xf32>
    %2 = tpu.matmul %0, %1, %cst {dimension_numbers = #tpu.dot_dimension_numbers<[1], [0], [0], [1], [0, 0, 1, 1], [], []>} : vector<64x16xf32>, vector<16x64xf32>, vector<64x64xf32> -> vector<64x64xf32>
    %c0_3 = arith.constant 0 : index
    %c0_4 = arith.constant 0 : index
    %3 = vector.load %arg3[%c0_3, %c0_4] : memref<64x64xf32, #tpu.memory_space<vmem>>, vector<64x64xf32>
    tpu.vector_store %arg3[%c0_3, %c0_4], %2 {strides = array<i32>} : memref<64x64xf32, #tpu.memory_space<vmem>>, vector<64x64xf32>,
    return
  }
  func.func @transform_0(%arg0: i32) -> (i32, i32) {
    %c0_i32 = arith.constant 0 : i32
    %c0_i32_0 = arith.constant 0 : i32
    return %arg0, %c0_i32 : i32, i32
  }
  func.func @transform_1(%arg0: i32) -> (i32, i32) {
    %c0_i32 = arith.constant 0 : i32
    %c0_i32_0 = arith.constant 0 : i32
    %c0_i32_1 = arith.constant 0 : i32
    return %c0_i32, %c0_i32_0 : i32, i32
  }
  func.func @transform_2(%arg0: i32) -> (i32, i32) {
    %c0_i32 = arith.constant 0 : i32
    %c0_i32_0 = arith.constant 0 : i32
    return %arg0, %c0_i32 : i32, i32
  }
}

</mosaic_0001>

<llo_original>
// kernel: tpu_custom_call.1
$region0: #{tpu_custom_call.1}
  #allocation0 [shape = 'u32[]', space=smem, size = 0x4, offset = 0x4, fixed_abs, tag = 'smem constant byte address 0x4 - core index']
  #allocation1 [shape = 'u32[72,128]{1,0:T(1,128)}', space=vmem, size = 0x9000, scoped, tag = 'internal scratch']
  %s0 = inlined_call_operand.vmem [shape: f32[128,16], index: 0, kind: input, shape index: {}]
  %s1 = inlined_call_operand.vmem [shape: f32[16,64], index: 1, kind: input, shape index: {}]
  %s2 = inlined_call_operand.vmem [shape: f32[128,64], index: 2, kind: output, shape index: {}]
  %s3 = sld [smem:[#allocation0]]
  $region41: #{tpu_custom_call.1} parent=0
    _
  %s5 = ssub.s32 1, %s3
  %s6 = scalar_select 0, %s5, %s3
  loop: start=0, step=1, limit=4
  $region2: #{tpu_custom_call.1} parent=0 // loop_pre_header
    _
  $region3: #{tpu_custom_call.1} parent=0 // loop_header
    %s8 = sphi 0, %s12
    %p9 = scmp.ge.s32.totalorder %s8, 4
    %s18 = sphi 0, %s20
    %s21 = sphi 0, %s18
    %s22 = sphi 0, %s21
    %s38 = sphi 0, %s22
    %s42 = sphi 0, %s42
    %s44 = sphi 0, %s42
    %s45 = sphi 0, %s44
    %s59 = sphi 0, %s45
    %s65 = sphi 0, %s67
    %s68 = sphi 0, %s65
    %s69 = sphi 0, %s68
    %s85 = sphi 0, %s69
  $region4: #{tpu_custom_call.1} parent=0 // loop_header_branch
    %11 = sbr.rel (%p9) target = $region8
  $region5: #{tpu_custom_call.1} parent=0 // loop_body
    %s13 = ssub.s32 %s8, 1
    %s14 = ssub.s32 %s8, 2
    %s15 = sadd.s32 %s8, 1
    %s16 = ssub.s32 %s8, %s15
    %p17 = scmp.eq.s32.totalorder %s16, 0
    %s19 = sadd.s32 %s18, 1
    %s20 = scalar_select %p17, %s18, %s19
    %p23 = pneg %p17
    %p24 = scmp.eq.s32.totalorder %s8, 1
    %p25 = por %p23, %p24
    %p26 = scmp.ne.s32.totalorder %s18, %s21
    %p27 = scmp.eq.s32.totalorder %s8, 0
    %p28 = por %p26, %p27
    %p29 = scmp.ne.s32.totalorder %s18, %s21
    %p30 = scmp.eq.s32.totalorder %s13, 1
    %p31 = por %p29, %p30
    %p32 = scmp.ne.s32.totalorder %s21, %s22
    %p33 = scmp.eq.s32.totalorder %s13, 0
    %p34 = por %p32, %p33
    %p35 = scmp.ne.s32.totalorder %s21, %s22
    %p36 = scmp.eq.s32.totalorder %s14, 1
    %p37 = por %p35, %p36
    %p39 = scmp.ne.s32.totalorder %s22, %s38
    %p40 = scmp.eq.s32.totalorder %s14, 0
    %p41 = por %p39, %p40
    %s43 = sadd.s32 %s42, 1
    %p46 = scmp.eq.s32.totalorder %s8, 1
    %p47 = scmp.ne.s32.totalorder %s42, %s44
    %p48 = scmp.eq.s32.totalorder %s8, 0
    %p49 = por %p47, %p48
    %p50 = scmp.ne.s32.totalorder %s42, %s44
    %p51 = scmp.eq.s32.totalorder %s13, 1
    %p52 = por %p50, %p51
    %p53 = scmp.ne.s32.totalorder %s44, %s45
    %p54 = scmp.eq.s32.totalorder %s13, 0
    %p55 = por %p53, %p54
    %p56 = scmp.ne.s32.totalorder %s44, %s45
    %p57 = scmp.eq.s32.totalorder %s14, 1
    %p58 = por %p56, %p57
    %p60 = scmp.ne.s32.totalorder %s45, %s59
    %p61 = scmp.eq.s32.totalorder %s14, 0
    %p62 = por %p60, %p61
    %s63 = ssub.s32 %s8, %s15
    %p64 = scmp.eq.s32.totalorder %s63, 0
    %s66 = sadd.s32 %s65, 1
    %s67 = scalar_select %p64, %s65, %s66
    %p70 = pneg %p64
    %p71 = scmp.eq.s32.totalorder %s8, 1
    %p72 = por %p70, %p71
    %p73 = scmp.ne.s32.totalorder %s65, %s68
    %p74 = scmp.eq.s32.totalorder %s8, 0
    %p75 = por %p73, %p74
    %p76 = scmp.ne.s32.totalorder %s65, %s68
    %p77 = scmp.eq.s32.totalorder %s13, 1
    %p78 = por %p76, %p77
    %p79 = scmp.ne.s32.totalorder %s68, %s69
    %p80 = scmp.eq.s32.totalorder %s13, 0
    %p81 = por %p79, %p80
    %p82 = scmp.ne.s32.totalorder %s68, %s69
    %p83 = scmp.eq.s32.totalorder %s14, 1
    %p84 = por %p82, %p83
    %p86 = scmp.ne.s32.totalorder %s69, %s85
    %p87 = scmp.eq.s32.totalorder %s14, 0
    %p88 = por %p86, %p87
    %p89 = scmp.le.s32.totalorder 1, %s8
    %p90 = scmp.lt.s32.totalorder %s8, 3
    %p91 = pnand %p89, %p90
    %p92 = pneg %p91
    // Predicated region
    $region9: #{tpu_custom_call.1} parent=5 // pred_check
      _
    $region10: #{tpu_custom_call.1} parent=5 // pred_check_branch
      %94 = sbr.rel (%p91) target = $region12
    $region11: #{tpu_custom_call.1} parent=5 // pred_region
      %s95 = ssub.s32 %s8, 1
      // Predicated region
      $region13: #{tpu_custom_call.1} parent=11 // pred_check
        %p96 = pneg %p55
      $region14: #{tpu_custom_call.1} parent=11 // pred_check_branch
        %98 = sbr.rel (%p96) target = $region16
      $region15: #{tpu_custom_call.1} parent=11 // pred_region
        _
      $region16: #{tpu_custom_call.1} parent=11 // pred_fallthru
        _
    $region12: #{tpu_custom_call.1} parent=5 // pred_fallthru
      _
    %p99 = scmp.lt.s32.totalorder %s8, 2
    // Predicated region
    $region17: #{tpu_custom_call.1} parent=5 // pred_check
      %p100 = pneg %p99
    $region18: #{tpu_custom_call.1} parent=5 // pred_check_branch
      %102 = sbr.rel (%p100) target = $region20
    $region19: #{tpu_custom_call.1} parent=5 // pred_region
      // Predicated region
      $region21: #{tpu_custom_call.1} parent=19 // pred_check
        %p103 = pneg %p28
      $region22: #{tpu_custom_call.1} parent=19 // pred_check_branch
        %105 = sbr.rel (%p103) target = $region24
      $region23: #{tpu_custom_call.1} parent=19 // pred_region
        %s106 = smul.u32 8, %s8
        %p107 = scmp.lt.s32.totalorder %s106, 15
        %s108 = scalar_select %p107, %s106, 15
        %s109 = smul.addr %s108, 8
        %s110 = scalar_lea.vmem %s0, %s109
        %s111 = smul.u32 8, %s8
      $region24: #{tpu_custom_call.1} parent=19 // pred_fallthru
        _
    $region20: #{tpu_custom_call.1} parent=5 // pred_fallthru
      _
    %p112 = scmp.le.s32.totalorder 1, %s8
    %p113 = scmp.lt.s32.totalorder %s8, 3
    %p114 = pnand %p112, %p113
    %p115 = pneg %p114
    // Predicated region
    $region25: #{tpu_custom_call.1} parent=5 // pred_check
      _
    $region26: #{tpu_custom_call.1} parent=5 // pred_check_branch
      %117 = sbr.rel (%p114) target = $region28
    $region27: #{tpu_custom_call.1} parent=5 // pred_region
      %s118 = ssub.s32 %s8, 1
      %s119 = smul.u32 8, %s13
      %p120 = scmp.lt.s32.totalorder %s119, 15
      %s121 = scalar_select %p120, %s119, 15
      %s122 = smul.addr %s121, 8
      %s123 = scalar_lea.vmem %s0, %s122
      %p124 = pneg %p34
      %p125 = pneg %p31
      %p126 = pneg %p55
      %p127 = pneg %p52
      %p128 = pneg %p81
      %p129 = pneg %p78
      %s130 = smul.u32 8, %s13
      %p131 = scmp.lt.s32.totalorder %s130, 15
      %s132 = scalar_select %p131, %s130, 15
      %s133 = smul.addr %s132, 8
      %s134 = scalar_lea.vmem %s2, %s133
      %s135 = smul.u32 8, %s13
      %p136 = scmp.lt.s32.totalorder %s135, 15
      %s137 = scalar_select %p136, %s135, 15
      %s138 = smul.addr %s137, 8
      %s139 = scalar_lea.vmem %s0, %s138
      %s140 = smul.u32 8, %s13
      %s141 = smul.u32 8, %s13
      %p142 = scmp.lt.s32.totalorder %s141, 15
      %s143 = scalar_select %p142, %s141, 15
      %s144 = smul.addr %s143, 8
      %s145 = scalar_lea.vmem %s2, %s144
      %s146 = smul.u32 8, %s13
      %v147 = vld [vmem:[%s139] sm:$0xff]
      %v148 = vld [vmem:[%s139 + $0x8] sm:$0xff]
      %v149 = vld [vmem:[%s139 + $0x10] sm:$0xff]
      %v150 = vld [vmem:[%s139 + $0x18] sm:$0xff]
      %v151 = vld [vmem:[%s139 + $0x20] sm:$0xff]
      %v152 = vld [vmem:[%s139 + $0x28] sm:$0xff]
      %v153 = vld [vmem:[%s139 + $0x30] sm:$0xff]
      %v154 = vld [vmem:[%s139 + $0x38] sm:$0xff]
      %v155 = vld [vmem:[%s1] sm:$0xff]
      %v156 = vld [vmem:[%s1 + $0x8] sm:$0xff]
      %vm157 = vcmask 130048
      %v159 = vsel %vm157, %v147, 0
      %v162 = vsel %vm157, %v148, 0
      %v165 = vsel %vm157, %v149, 0
      %v168 = vsel %vm157, %v150, 0
      %v171 = vsel %vm157, %v151, 0
      %v174 = vsel %vm157, %v152, 0
      %v177 = vsel %vm157, %v153, 0
      %v180 = vsel %vm157, %v154, 0
      %182 = vmatpush.msra.mxu0 0.0
      %183 = vmatpush.msra.mxu0 0.0
      %184 = vmatpush.msra.mxu0 0.0
      %185 = vmatpush.msra.mxu0 0.0
      %186 = vmatpush.msra.mxu0 0.0
      %187 = vmatpush.msra.mxu0 0.0
      %188 = vmatpush.msra.mxu0 0.0
      %189 = vmatpush.msra.mxu0 0.0
      %190 = vmatpush.msra.mxu0 0.0
      %191 = vmatpush.msra.mxu0 0.0
      %192 = vmatpush.msra.mxu0 0.0
      %193 = vmatpush.msra.mxu0 0.0
      %194 = vmatpush.msra.mxu0 0.0
      %195 = vmatpush.msra.mxu0 0.0
      %196 = vmatpush.msra.mxu0 %v156
      %197 = vmatpush.msra.mxu0 %v155
      %198 = vmatmul.f32.gmra.mxu0 %v159
      %v199 = vpop.f32.mrf.mxu0
      %v200 = vadd.f32 0.0, %v199
      %201 = vmatmul.f32.gmra.mxu0 %v162
      %v202 = vpop.f32.mrf.mxu0
      %v203 = vadd.f32 0.0, %v202
      %204 = vmatmul.f32.gmra.mxu0 %v165
      %v205 = vpop.f32.mrf.mxu0
      %v206 = vadd.f32 0.0, %v205
      %207 = vmatmul.f32.gmra.mxu0 %v168
      %v208 = vpop.f32.mrf.mxu0
      %v209 = vadd.f32 0.0, %v208
      %210 = vmatmul.f32.gmra.mxu0 %v171
      %v211 = vpop.f32.mrf.mxu0
      %v212 = vadd.f32 0.0, %v211
      %213 = vmatmul.f32.gmra.mxu0 %v174
      %v214 = vpop.f32.mrf.mxu0
      %v215 = vadd.f32 0.0, %v214
      %216 = vmatmul.f32.gmra.mxu0 %v177
      %v217 = vpop.f32.mrf.mxu0
      %v218 = vadd.f32 0.0, %v217
      %219 = vmatmul.f32.gmra.mxu0 %v180
      %v220 = vpop.f32.mrf.mxu0
      %v221 = vadd.f32 0.0, %v220
      %222 = vdwg.mxu0
      %vm223 = vcmask 523264
      %224 = vst.msk [vmem:[%s145] sm:$0xff] %vm223, %v200
      %225 = vst.msk [vmem:[%s145 + $0x8] sm:$0xff] %vm223, %v203
      %226 = vst.msk [vmem:[%s145 + $0x10] sm:$0xff] %vm223, %v206
      %227 = vst.msk [vmem:[%s145 + $0x18] sm:$0xff] %vm223, %v209
      %228 = vst.msk [vmem:[%s145 + $0x20] sm:$0xff] %vm223, %v212
      %229 = vst.msk [vmem:[%s145 + $0x28] sm:$0xff] %vm223, %v215
      %230 = vst.msk [vmem:[%s145 + $0x30] sm:$0xff] %vm223, %v218
      %231 = vst.msk [vmem:[%s145 + $0x38] sm:$0xff] %vm223, %v221
      %s232 = smul.u32 8, %s13
      %p233 = scmp.lt.s32.totalorder %s232, 15
      %s234 = scalar_select %p233, %s232, 15
      %s235 = smul.addr %s234, 8
      %s236 = scalar_lea.vmem %s2, %s235
      // Predicated region
      $region29: #{tpu_custom_call.1} parent=27 // pred_check
        %p237 = pneg %p78
      $region30: #{tpu_custom_call.1} parent=27 // pred_check_branch
        %239 = sbr.rel (%p237) target = $region32
      $region31: #{tpu_custom_call.1} parent=27 // pred_region
        %s240 = smul.u32 8, %s13
      $region32: #{tpu_custom_call.1} parent=27 // pred_fallthru
        _
    $region28: #{tpu_custom_call.1} parent=5 // pred_fallthru
      _
    %p241 = scmp.le.s32.totalorder 2, %s8
    // Predicated region
    $region33: #{tpu_custom_call.1} parent=5 // pred_check
      %p242 = pneg %p241
    $region34: #{tpu_custom_call.1} parent=5 // pred_check_branch
      %244 = sbr.rel (%p242) target = $region36
    $region35: #{tpu_custom_call.1} parent=5 // pred_region
      %s245 = ssub.s32 %s8, 2
      // Predicated region
      $region37: #{tpu_custom_call.1} parent=35 // pred_check
        %p246 = pneg %p84
      $region38: #{tpu_custom_call.1} parent=35 // pred_check_branch
        %248 = sbr.rel (%p246) target = $region40
      $region39: #{tpu_custom_call.1} parent=35 // pred_region
        %s249 = smul.u32 8, %s14
        %p250 = scmp.lt.s32.totalorder %s249, 15
        %s251 = scalar_select %p250, %s249, 15
        %s252 = smul.addr %s251, 8
        %s253 = scalar_lea.vmem %s2, %s252
      $region40: #{tpu_custom_call.1} parent=35 // pred_fallthru
        _
    $region36: #{tpu_custom_call.1} parent=5 // pred_fallthru
      _
  $region6: #{tpu_custom_call.1} parent=0 // loop_footer
    %s12 = sadd.s32 1, %s8
  $region7: #{tpu_custom_call.1} parent=0 // loop_footer_branch
    %7 = sbr.rel target = $region3
  $region8: #{tpu_custom_call.1} parent=0 // loop_exit
    _

</llo_original>
